<compile_context>
chip_gen: v6e
topology: v6e:2x2x1
jax: 0.10.0
libtpu: 0.0.40
codegen_flags: <defaults>
</compile_context>

<pallas_src>
import functools

import jax
import jax.numpy as jnp
from jax.experimental import pallas as pl
from jax.experimental.pallas import tpu as pltpu

EPS = 1e-8
LANE = 128
SUBLANE = 8
MAX_TF = 2048                      # lane-dense feature-tile cap (lanes)
MIN_BLOCK_BYTES = 512 * 1024       # don't shrink blocks below this when adding grid steps


# -----------------------------------------------------------------------------
# Host-side helpers (hardware query, tile selection)
# -----------------------------------------------------------------------------
def _cdiv(a: int, b: int) -> int:
    return -(-a // b)


def _round_up(x: int, m: int) -> int:
    return (x + m - 1) // m * m


@functools.lru_cache(maxsize=None)
def _hw_params():
    """Generation-aware budgets. Falls back to conservative defaults if the
    hardware query is unavailable (e.g. interpret mode)."""
    vmem_cap = None
    try:
        vmem_cap = int(pltpu.get_tpu_info().vmem_capacity_bytes)
    except Exception:  # pragma: no cover - defensive, keeps the kernel runnable anywhere
        vmem_cap = None
    if vmem_cap is None:
        # Unknown chip: safe everywhere (v5e default scoped VMEM is only 16 MiB).
        return {"vmem_limit": 32 << 20, "block_bytes": 4 << 20, "min_steps": 2}
    if vmem_cap >= 100 * (1 << 20):
        # v5e / v6e: 128 MiB physical VMEM -> bigger blocks + bigger fused threshold.
        return {"vmem_limit": 64 << 20, "block_bytes": 8 << 20, "min_steps": 2}
    # v7x-class: ~64 MiB physical VMEM per TensorCore, 2 TCs -> prefer >=4 grid steps.
    return {"vmem_limit": 48 << 20, "block_bytes": 8 << 20, "min_steps": 4}


def _elem_block_bytes(itemsize: int, hw) -> int:
    """Block byte budget for the tiled elementwise kernels (apply / sums).
    Per big block the pipeline holds ~2x input + 2x output buffers plus f32
    temporaries, so cap the block so the total stays inside the scoped VMEM limit."""
    mult = 4 + 2 * max(1, 4 // itemsize) + 1
    return min(hw["block_bytes"], hw["vmem_limit"] // mult)


def _fused_block_bytes(hw) -> int:
    """f32-denominated budget for the single (B, tf) block of the fused fit / Welford
    kernels (double-buffered in/out plus a few f32 temps live inside the body; the
    f32 temps dominate regardless of the input dtype)."""
    return max(1 << 20, hw["vmem_limit"] // 10)


def _fused_max_rows(hw) -> int:
    return _fused_block_bytes(hw) // (LANE * 4)


def _pick_tf(f: int, rows: int, itemsize: int, block_bytes: int, min_steps: int) -> int:
    """Feature tile (multiple of 128, <= F) so a (rows, tf) block stays ~<= block_bytes.
    Prefers >= min_steps feature grid steps (pipelining + work for both v7x TCs) as
    long as each block stays >= MIN_BLOCK_BYTES.  Ragged F tails become edge blocks."""
    if f <= LANE:
        return f                                   # full-feature block (full dim is legal)
    d = f // LANE                                  # full 128-lane groups
    group_bytes = max(rows, SUBLANE) * itemsize * LANE
    cap = min(MAX_TF // LANE, max(1, block_bytes // group_bytes))
    k = max(1, min(d, cap))
    target_k = max(1, _cdiv(d, min_steps))         # largest k giving >= min_steps steps
    floor_k = max(1, MIN_BLOCK_BYTES // group_bytes)
    k = min(k, max(target_k, floor_k))
    return k * LANE


def _pick_tb(batch: int, tf: int, itemsize: int, block_bytes: int) -> int:
    """Batch tile (multiple of 8) so a (tb, tf) block is ~block_bytes; use the whole
    batch as a single (legal full-dim) block when it fits."""
    tb = max(SUBLANE, (block_bytes // (tf * itemsize)) // SUBLANE * SUBLANE)
    if _round_up(batch, SUBLANE) <= tb:
        return batch
    return tb


# -----------------------------------------------------------------------------
# Pallas kernels
# -----------------------------------------------------------------------------
def _fit_norm_kernel(x_ref, out_ref, mean_ref, var_ref):
    """Whole batch per feature tile: batch mean/var (unbiased=False) + normalise.
    All math is per-lane; ragged feature edges are handled by masked edge stores."""
    x = x_ref[...].astype(jnp.float32)                        # (B, tf)
    mean = jnp.mean(x, axis=0, keepdims=True)                 # (1, tf)
    xc = x - mean                                             # reused for var and output
    var = jnp.mean(xc * xc, axis=0, keepdims=True)
    inv_std = 1.0 / (jnp.sqrt(var) + EPS)                     # one recip per feature
    out_ref[...] = (xc * inv_std).astype(out_ref.dtype)
    mean_ref[...] = mean
    var_ref[...] = var


def _welford_norm_kernel(n_ref, x_ref, mean_ref, m2_ref,
                         out_ref, new_mean_ref, new_m2_ref, new_var_ref):
    """Fused Welford buffer update + normalisation (single HBM pass over x).

    Matches torch:
      means += (d / new_n).mean(0) * m   ==  means + sum(d) / new_n
      m2    += (d * d2).mean(0) * m      ==  m2 + sum(d * d2)
      vars   = m2 / new_n
      out    = (x - means) / (sqrt(vars) + eps)
    """
    old_n = n_ref[0].astype(jnp.float32)
    x = x_ref[...].astype(jnp.float32)                        # (B, tf)
    m = jnp.float32(x.shape[0])
    old_mean = mean_ref[...]
    d = x - old_mean
    new_n = old_n + m
    new_mean = old_mean + jnp.sum(d, axis=0, keepdims=True) / new_n
    d2 = x - new_mean
    new_m2 = m2_ref[...] + jnp.sum(d * d2, axis=0, keepdims=True)
    new_var = jnp.maximum(new_m2 / new_n, 0.0)
    inv_std = 1.0 / (jnp.sqrt(new_var) + EPS)
    out_ref[...] = (d2 * inv_std).astype(out_ref.dtype)
    new_mean_ref[...] = new_mean
    new_m2_ref[...] = new_m2
    new_var_ref[...] = new_var


def _shifted_sums_kernel(x_ref, piv_ref, sum_ref, sq_ref, *, batch, tb, mask_batch):
    """Batch-tiled accumulator: per-feature sum((x - pivot)) and sum((x - pivot)^2).

    Output blocks are resident across the (last, 'arbitrary') batch grid axis and
    act as the accumulators.  The ragged batch tail mask is only compiled in when
    batch % tb != 0 (known at trace time)."""
    b = pl.program_id(1)

    @pl.when(b == 0)
    def _():
        sum_ref[...] = jnp.zeros_like(sum_ref)
        sq_ref[...] = jnp.zeros_like(sq_ref)

    d = x_ref[...].astype(jnp.float32) - piv_ref[...]         # (tb, tf)
    if mask_batch:
        row = b * tb + jax.lax.broadcasted_iota(jnp.int32, d.shape, 0)
        d = jnp.where(row < batch, d, 0.0)                    # zero padded batch rows
    sum_ref[...] += jnp.sum(d, axis=0, keepdims=True)
    sq_ref[...] += jnp.sum(d * d, axis=0, keepdims=True)


def _apply_kernel(x_ref, mean_ref, var_ref, out_ref):
    """Batch x feature tiled standardisation with externally supplied stats."""
    m = mean_ref[...]                                         # (1, tf)
    inv_std = 1.0 / (jnp.sqrt(var_ref[...]) + EPS)            # per-feature row, then multiply
    x = x_ref[...].astype(jnp.float32)                        # (tb, tf)
    out_ref[...] = ((x - m) * inv_std).astype(out_ref.dtype)


# -----------------------------------------------------------------------------
# pallas_call wrappers
# -----------------------------------------------------------------------------
def _apply(x, means, variances):
    """Elementwise normalisation on (B, F) input. Both grid axes 'parallel'."""
    batch, f = x.shape
    hw = _hw_params()
    itemsize = x.dtype.itemsize
    bb = _elem_block_bytes(itemsize, hw)
    tf = _pick_tf(f, 1024, itemsize, bb, hw["min_steps"])
    tb = _pick_tb(batch, tf, itemsize, bb)
    grid = (_cdiv(f, tf), _cdiv(batch, tb))     # feature outer -> stats blocks rarely change
    return pl.pallas_call(
        _apply_kernel,
        out_shape=jax.ShapeDtypeStruct((batch, f), x.dtype),
        grid=grid,
        in_specs=[
            pl.BlockSpec((tb, tf), lambda fi, bi: (bi, fi)),
            pl.BlockSpec((1, tf), lambda fi, bi: (0, fi)),
            pl.BlockSpec((1, tf), lambda fi, bi: (0, fi)),
        ],
        out_specs=pl.BlockSpec((tb, tf), lambda fi, bi: (bi, fi)),
        compiler_params=pltpu.CompilerParams(
            dimension_semantics=("parallel", "parallel"),
            vmem_limit_bytes=hw["vmem_limit"]),
    )(x, means.astype(jnp.float32), variances.astype(jnp.float32))


def _shifted_feature_sums(x, pivot, *, tb=None):
    """Per-feature sum(x - pivot) and sum((x - pivot)^2) over the batch
    (batch-tiled accumulator; block size independent of B)."""
    batch, f = x.shape
    hw = _hw_params()
    itemsize = x.dtype.itemsize
    bb = _elem_block_bytes(itemsize, hw)
    tf = _pick_tf(f, 1024, itemsize, bb, hw["min_steps"])
    if tb is None:
        tb = _pick_tb(batch, tf, itemsize, bb)
    grid = (_cdiv(f, tf), _cdiv(batch, tb))     # reduction (batch) axis last
    mask_batch = (batch % tb) != 0
    return pl.pallas_call(
        functools.partial(_shifted_sums_kernel, batch=batch, tb=tb, mask_batch=mask_batch),
        out_shape=(jax.ShapeDtypeStruct((1, f), jnp.float32),
                   jax.ShapeDtypeStruct((1, f), jnp.float32)),
        grid=grid,
        in_specs=[pl.BlockSpec((tb, tf), lambda fi, bi: (bi, fi)),
                  pl.BlockSpec((1, tf), lambda fi, bi: (0, fi))],
        out_specs=(pl.BlockSpec((1, tf), lambda fi, bi: (0, fi)),
                   pl.BlockSpec((1, tf), lambda fi, bi: (0, fi))),
        compiler_params=pltpu.CompilerParams(
            dimension_semantics=("parallel", "arbitrary"),
            vmem_limit_bytes=hw["vmem_limit"]),
    )(x, pivot.astype(jnp.float32))


@jax.jit
def apply_normalize(x, means, variances):
    """Eval / frozen mode: standardise with the stored running stats."""
    return _apply(x, means, variances)


@jax.jit
def fit_and_normalize(x):
    """Training-mode first call (n == 0): batch var_mean (unbiased=False) + standardise."""
    batch, f = x.shape
    hw = _hw_params()
    if batch <= _fused_max_rows(hw):
        # Single HBM read of x: whole batch per feature tile.
        tf = _pick_tf(f, batch, 4, _fused_block_bytes(hw), hw["min_steps"])
        grid = (_cdiv(f, tf),)
        out, mean, var = pl.pallas_call(
            _fit_norm_kernel,
            out_shape=(jax.ShapeDtypeStruct((batch, f), x.dtype),
                       jax.ShapeDtypeStruct((1, f), jnp.float32),
                       jax.ShapeDtypeStruct((1, f), jnp.float32)),
            grid=grid,
            in_specs=[pl.BlockSpec((batch, tf), lambda j: (0, j))],
            out_specs=(pl.BlockSpec((batch, tf), lambda j: (0, j)),
                       pl.BlockSpec((1, tf), lambda j: (0, j)),
                       pl.BlockSpec((1, tf), lambda j: (0, j))),
            compiler_params=pltpu.CompilerParams(
                dimension_semantics=("parallel",),
                vmem_limit_bytes=hw["vmem_limit"]),
        )(x)
    else:
        # Very large batch: block size must not scale with B -> shifted-sums pass +
        # apply pass.  Pivot = first row of the batch keeps E[(x-p)^2] - E[x-p]^2
        # well conditioned (|mean - p| ~ O(std) instead of O(|mean|)).
        pivot = jax.lax.slice(x, (0, 0), (1, f)).astype(jnp.float32)
        s, sq = _shifted_feature_sums(x, pivot)
        mb = jnp.float32(batch)
        dm = s / mb
        mean = pivot + dm
        var = jnp.maximum(sq / mb - dm * dm, 0.0)
        out = _apply(x, mean, var)
    return out, mean, var


@jax.jit
def welford_update_and_normalize(x, means, m2, n):
    """Training-mode n > 0: Welford update of means/m2/vars + standardise with the
    UPDATED stats.  Fused (single HBM read of x) for moderate batches."""
    batch, f = x.shape
    hw = _hw_params()
    means = means.astype(jnp.float32)
    m2 = m2.astype(jnp.float32)
    if batch <= _fused_max_rows(hw):
        tf = _pick_tf(f, batch, 4, _fused_block_bytes(hw), hw["min_steps"])
        grid = (_cdiv(f, tf),)
        n_arr = jnp.reshape(n, (1,)).astype(jnp.int32)   # scalar prefetch -> no retrace per step
        out, nm, nm2, nv = pl.pallas_call(
            _welford_norm_kernel,
            out_shape=(jax.ShapeDtypeStruct((batch, f), x.dtype),
                       jax.ShapeDtypeStruct((1, f), jnp.float32),
                       jax.ShapeDtypeStruct((1, f), jnp.float32),
                       jax.ShapeDtypeStruct((1, f), jnp.float32)),
            grid_spec=pltpu.PrefetchScalarGridSpec(
                num_scalar_prefetch=1,
                grid=grid,
                in_specs=[pl.BlockSpec((batch, tf), lambda j, n_s: (0, j)),
                          pl.BlockSpec((1, tf), lambda j, n_s: (0, j)),
                          pl.BlockSpec((1, tf), lambda j, n_s: (0, j))],
                out_specs=(pl.BlockSpec((batch, tf), lambda j, n_s: (0, j)),
                           pl.BlockSpec((1, tf), lambda j, n_s: (0, j)),
                           pl.BlockSpec((1, tf), lambda j, n_s: (0, j)),
                           pl.BlockSpec((1, tf), lambda j, n_s: (0, j)))),
            compiler_params=pltpu.CompilerParams(
                dimension_semantics=("parallel",),
                vmem_limit_bytes=hw["vmem_limit"]),
        )(n_arr, x, means, m2)
    else:
        # Very large batch: one shifted-sums pass (pivot = old means, the natural
        # Welford shift), a tiny (1, F) update, and the apply pass.
        # With d = x - old_means: sum(d * (x - new_means)) == sum(d^2) - (sum d)^2 / new_n.
        s, sq = _shifted_feature_sums(x, means)
        mb = jnp.float32(batch)
        new_n = n.astype(jnp.float32) + mb
        nm = means + s / new_n
        nm2 = m2 + sq - (s * s) / new_n
        nv = jnp.maximum(nm2 / new_n, 0.0)
        out = _apply(x, nm, nv)
    return out, nm, nm2, nv


# -----------------------------------------------------------------------------
# Module-like wrapper mirroring IterativeNormLayer (buffers / state on the host)
# -----------------------------------------------------------------------------
class IterativeNormLayerPallas:
    """Mirror of IterativeNormLayer(inpt_dim=int, dims=(), ema_sync=0.0) forward."""

    def __init__(self, inpt_dim: int, max_n: int = 100000, ema_sync: float = 0.0):
        if ema_sync > 0.0:
            # TODO(synk): EMA update path (_apply_ema_update) not implemented.
            raise NotImplementedError("ema_sync > 0 is not supported")
        self.inpt_dim = inpt_dim
        self.max_n = max_n
        self.means = jnp.zeros((1, inpt_dim), jnp.float32)
        self.vars = jnp.ones((1, inpt_dim), jnp.float32)
        # TODO(synk): torch keeps m2 in float64; kept float32 here (TPU default), so
        # incremental stats can drift for very large n / large offsets.
        self.m2 = jnp.ones((1, inpt_dim), jnp.float32)
        self.n = 0
        self.frozen = False
        self.training = True

    def __call__(self, x, mask=None):
        # TODO(synk): boolean-mask gather/scatter (_mask/_unmask) is data-dependent
        # compaction with no clean Pallas equivalent; only mask=None is supported.
        assert mask is None, "mask is not supported"
        if self.training and not self.frozen:
            if self.n >= self.max_n:
                self.frozen = True               # torch: update() freezes, then normalises
            elif self.n == 0:
                if x.shape[0] <= 1:
                    raise ValueError("Cannot fit with a single sample, increase batch size")
                out, m, v = fit_and_normalize(x)
                self.means, self.vars = m, v
                self.n = int(x.shape[0])
                self.m2 = v * jnp.float32(self.n)
                return out
            else:
                out, m, m2, v = welford_update_and_normalize(
                    x, self.means, self.m2, jnp.int32(self.n))
                self.means, self.m2, self.vars = m, m2, v
                self.n += int(x.shape[0])
                return out
        return apply_normalize(x, self.means, self.vars)

    def reverse(self, x, mask=None):
        # Tiny op; left in plain JAX.
        assert mask is None
        return x * jnp.sqrt(self.vars) + self.means


# -----------------------------------------------------------------------------
# Demo / self-check
# -----------------------------------------------------------------------------
if __name__ == "__main__":
    key = jax.random.PRNGKey(0)
    k1, k2, k3, k4 = jax.random.split(key, 4)

    B, F = 8, 256
    x1 = 2.0 * jax.random.normal(k1, (B, F), jnp.float32) + 1.5
    x2 = 0.5 * jax.random.normal(k2, (B, F), jnp.float32) - 3.0
    x3 = jax.random.normal(k3, (B, F), jnp.float32)

    layer = IterativeNormLayerPallas(inpt_dim=F)

    # 1) training, n == 0: fused fit + normalise.
    out1 = jax.block_until_ready(layer(x1))
    m0 = jnp.mean(x1, axis=0, keepdims=True)
    v0 = jnp.mean((x1 - m0) ** 2, axis=0, keepdims=True)
    ref1 = (x1 - m0) / (jnp.sqrt(v0) + EPS)
    assert out1.shape == x1.shape
    assert jnp.allclose(out1, ref1, atol=1e-5, rtol=1e-5)
    assert jnp.allclose(layer.means, m0, atol=1e-5, rtol=1e-5)
    assert jnp.allclose(layer.vars, v0, atol=1e-5, rtol=1e-5)

    # 2) training, n > 0: fused Welford update + normalise.
    out2 = jax.block_until_ready(layer(x2))
    n1 = B + B
    d = x2 - m0
    m1 = m0 + jnp.mean(d / n1, axis=0, keepdims=True) * B
    d2 = x2 - m1
    m2_1 = v0 * B + jnp.mean(d * d2, axis=0, keepdims=True) * B
    v1 = m2_1 / n1
    ref2 = (x2 - m1) / (jnp.sqrt(v1) + EPS)
    assert layer.n == n1
    assert jnp.allclose(out2, ref2, atol=1e-5, rtol=1e-5)
    assert jnp.allclose(layer.means, m1, atol=1e-5, rtol=1e-5)
    assert jnp.allclose(layer.vars, v1, atol=1e-5, rtol=1e-5)

    # 3) eval / frozen: tiled apply kernel with the stored stats.
    layer.training = False
    out3 = jax.block_until_ready(layer(x3))
    ref3 = (x3 - layer.means) / (jnp.sqrt(layer.vars) + EPS)
    assert jnp.allclose(out3, ref3, atol=1e-5, rtol=1e-5)

    # 4) Non-multiple-of-128 features + ragged batch: exercises in-kernel ragged
    #    feature edge blocks (no host-side padding / slicing).
    Bb, Ff = 20, 200
    xb = 3.0 * jax.random.normal(k4, (Bb, Ff), jnp.float32) + 0.7
    layer_b = IterativeNormLayerPallas(inpt_dim=Ff)
    out_b = jax.block_until_ready(layer_b(xb))
    mb = jnp.mean(xb, axis=0, keepdims=True)
    vb = jnp.mean((xb - mb) ** 2, axis=0, keepdims=True)
    ref_b = (xb - mb) / (jnp.sqrt(vb) + EPS)
    assert out_b.shape == (Bb, Ff)
    assert layer_b.means.shape == (1, Ff)
    assert jnp.allclose(out_b, ref_b, atol=1e-5, rtol=1e-5)
    assert jnp.allclose(layer_b.means, mb, atol=1e-5, rtol=1e-5)
    assert jnp.allclose(layer_b.vars, vb, atol=1e-5, rtol=1e-5)

    # 5) Directly exercise the batch-tiled shifted-sums accumulator kernel with a
    #    forced small batch tile (ragged batch tail mask + ragged feature edge).
    zero_piv = jnp.zeros((1, Ff), jnp.float32)
    s, sq = jax.block_until_ready(_shifted_feature_sums(xb, zero_piv, tb=SUBLANE))
    assert jnp.allclose(s, jnp.sum(xb, axis=0, keepdims=True), atol=1e-3, rtol=1e-4)
    assert jnp.allclose(sq, jnp.sum(xb * xb, axis=0, keepdims=True), atol=1e-3, rtol=1e-4)

    print("KERNEL_OK")
</pallas_src>

<mosaic_0001>
module attributes {stable_mosaic.version = 11 : i64} {
  func.func @_fit_norm_kernel(%arg0: i32, %arg1: memref<8x256xf32, #tpu.memory_space<vmem>>, %arg2: memref<8x256xf32, #tpu.memory_space<vmem>>, %arg3: memref<1x256xf32, #tpu.memory_space<vmem>>, %arg4: memref<1x256xf32, #tpu.memory_space<vmem>>) attributes {dimension_semantics = [#tpu.dimension_semantics<parallel>], iteration_bounds = array<i64: 1>, scalar_prefetch = 0 : i64, scratch_operands = 0 : i64, tpu.core_type = #tpu.core_type<tc>, window_params = [{transform_indices = @transform_0, window_bounds = array<i64: 8, 256>}, {transform_indices = @transform_1, window_bounds = array<i64: 8, 256>}, {transform_indices = @transform_2, window_bounds = array<i64: 1, 256>}, {transform_indices = @transform_3, window_bounds = array<i64: 1, 256>}]} {
    %c0 = arith.constant 0 : index
    %c0_0 = arith.constant 0 : index
    %0 = vector.load %arg1[%c0, %c0_0] : memref<8x256xf32, #tpu.memory_space<vmem>>, vector<8x256xf32>
    %cst = arith.constant dense<0.000000e+00> : vector<256xf32>
    %1 = vector.multi_reduction <add>, %0, %cst [0] : vector<8x256xf32> to vector<256xf32>
    %2 = vector.shape_cast %1 : vector<256xf32> to vector<1x256xf32>
    %cst_1 = arith.constant 8.000000e+00 : f32
    %3 = vector.broadcast %cst_1 : f32 to vector<1x256xf32>
    %4 = arith.divf %2, %3 : vector<1x256xf32>
    %5 = vector.broadcast %4 : vector<1x256xf32> to vector<8x256xf32>
    %6 = arith.subf %0, %5 : vector<8x256xf32>
    %7 = arith.mulf %6, %6 : vector<8x256xf32>
    %cst_2 = arith.constant dense<0.000000e+00> : vector<256xf32>
    %8 = vector.multi_reduction <add>, %7, %cst_2 [0] : vector<8x256xf32> to vector<256xf32>
    %9 = vector.shape_cast %8 : vector<256xf32> to vector<1x256xf32>
    %cst_3 = arith.constant 8.000000e+00 : f32
    %10 = vector.broadcast %cst_3 : f32 to vector<1x256xf32>
    %11 = arith.divf %9, %10 : vector<1x256xf32>
    %12 = math.sqrt %11 : vector<1x256xf32>
    %cst_4 = arith.constant 9.99999993E-9 : f32
    %13 = vector.broadcast %cst_4 : f32 to vector<1x256xf32>
    %14 = arith.addf %12, %13 : vector<1x256xf32>
    %cst_5 = arith.constant 1.000000e+00 : f32
    %15 = vector.broadcast %cst_5 : f32 to vector<1x256xf32>
    %16 = arith.divf %15, %14 : vector<1x256xf32>
    %17 = vector.broadcast %16 : vector<1x256xf32> to vector<8x256xf32>
    %18 = arith.mulf %6, %17 : vector<8x256xf32>
    %c0_6 = arith.constant 0 : index
    %c0_7 = arith.constant 0 : index
    %19 = vector.load %arg2[%c0_6, %c0_7] : memref<8x256xf32, #tpu.memory_space<vmem>>, vector<8x256xf32>
    tpu.vector_store %arg2[%c0_6, %c0_7], %18 {strides = array<i32>} : memref<8x256xf32, #tpu.memory_space<vmem>>, vector<8x256xf32>,
    %c0_8 = arith.constant 0 : index
    %c0_9 = arith.constant 0 : index
    %20 = vector.load %arg3[%c0_8, %c0_9] : memref<1x256xf32, #tpu.memory_space<vmem>>, vector<1x256xf32>
    tpu.vector_store %arg3[%c0_8, %c0_9], %4 {strides = array<i32>} : memref<1x256xf32, #tpu.memory_space<vmem>>, vector<1x256xf32>,
    %c0_10 = arith.constant 0 : index
    %c0_11 = arith.constant 0 : index
    %21 = vector.load %arg4[%c0_10, %c0_11] : memref<1x256xf32, #tpu.memory_space<vmem>>, vector<1x256xf32>
    tpu.vector_store %arg4[%c0_10, %c0_11], %11 {strides = array<i32>} : memref<1x256xf32, #tpu.memory_space<vmem>>, vector<1x256xf32>,
    return
  }
  func.func @transform_0(%arg0: i32) -> (i32, i32) {
    %c0_i32 = arith.constant 0 : i32
    %c0_i32_0 = arith.constant 0 : i32
    return %c0_i32, %arg0 : i32, i32
  }
  func.func @transform_1(%arg0: i32) -> (i32, i32) {
    %c0_i32 = arith.constant 0 : i32
    %c0_i32_0 = arith.constant 0 : i32
    return %c0_i32, %arg0 : i32, i32
  }
  func.func @transform_2(%arg0: i32) -> (i32, i32) {
    %c0_i32 = arith.constant 0 : i32
    %c0_i32_0 = arith.constant 0 : i32
    return %c0_i32, %arg0 : i32, i32
  }
  func.func @transform_3(%arg0: i32) -> (i32, i32) {
    %c0_i32 = arith.constant 0 : i32
    %c0_i32_0 = arith.constant 0 : i32
    return %c0_i32, %arg0 : i32, i32
  }
}

</mosaic_0001>

<llo_original>
// kernel: fit_and_normalize.1
$region0: #{fit_and_normalize.1}
  #allocation0 [shape = 'u32[]', space=smem, size = 0x4, offset = 0x4, fixed_abs, tag = 'smem constant byte address 0x4 - core index']
  #allocation1 [shape = 'u32[144,128]{1,0:T(1,128)}', space=vmem, size = 0x12000, scoped, tag = 'internal scratch']
  %s0 = inlined_call_operand.hbm [shape: f32[8,256], index: 0, kind: input, shape index: {}]
  %s1 = inlined_call_operand.hbm [shape: f32[8,256], index: 1, kind: output, shape index: {0}]
  %s2 = inlined_call_operand.hbm [shape: f32[1,256], index: 2, kind: output, shape index: {1}]
  %s3 = inlined_call_operand.hbm [shape: f32[1,256], index: 3, kind: output, shape index: {2}]
  %4 = xla_tuple %s1, %s2, %s3
  %s5 = sld [smem:[#allocation0]]
  $region34: #{fit_and_normalize.1} parent=0
    _
  %s7 = ssub.s32 1, %s5
  %s8 = scalar_select 0, %s7, %s5
  $region1: #{fit_and_normalize.1} parent=0
    #allocation2 [shape = 'u8[8192]{0}', space=vmem, size = 0x2000, scoped, tag = 'input window, operand 0, single buffered']
    #allocation3 [shape = 's32[1]{0}', space=sflag, size = 0x4, scoped, tag = 'scoped memory for fit_and_normalize.1']
    #allocation4 [shape = 's32[1]{0}', space=sflag, size = 0x4, scoped, tag = 'scoped memory for fit_and_normalize.1']
    #allocation5 [shape = 'u8[8192]{0}', space=vmem, size = 0x2000, scoped, tag = 'output window, operand 0, single buffered']
    #allocation6 [shape = 'u8[1024]{0}', space=vmem, size = 0x400, scoped, tag = 'output window, operand 1, single buffered']
    #allocation7 [shape = 's32[1]{0}', space=sflag, size = 0x4, scoped, tag = 'scoped memory for fit_and_normalize.1']
    #allocation8 [shape = 'u8[1024]{0}', space=vmem, size = 0x400, scoped, tag = 'output window, operand 2, single buffered']
    %9 = vsyncpa [#allocation3], 0
    %10 = vsyncpa [#allocation4], 0
    %11 = vsyncpa [#allocation7], 0
    // Predicated region
    $region2: #{fit_and_normalize.1} parent=1 // pred_check
      _
    $region3: #{fit_and_normalize.1} parent=1 // pred_check_branch
      %13 = sbr.rel (0) target = $region5
    $region4: #{fit_and_normalize.1} parent=1 // pred_region
      %s15 = ssub.s32 256, 256
      %16 = vsyncadd [#allocation3], %s15
      %s18 = sshll.u32 [#allocation2], 4
      %s19 = int_to_ptr.vmem [resolvable:$true] %s18
      %21 = dma.hbm_to_vmem [thread:$0]  %s0, 256, %s19, [#allocation3]
    $region5: #{fit_and_normalize.1} parent=1 // pred_fallthru
      _
    // Predicated region
    $region6: #{fit_and_normalize.1} parent=1 // pred_check
      _
    $region7: #{fit_and_normalize.1} parent=1 // pred_check_branch
      %23 = sbr.rel (0) target = $region9
    $region8: #{fit_and_normalize.1} parent=1 // pred_region
      %24 = dma.done [#allocation3], 256
    $region9: #{fit_and_normalize.1} parent=1 // pred_fallthru
      _
    %v25 = vld [vmem:[#allocation2] sm:$0xff]
    %v26 = vld [vmem:[#allocation2 + $0x8] sm:$0xff]
    %v27 = vrot.slane %v25, 4
    %v28 = vadd.f32 %v25, %v27
    %v29 = vrot.slane %v28, 2
    %v30 = vadd.f32 %v28, %v29
    %v31 = vrot.slane %v30, 1
    %v32 = vadd.f32 %v30, %v31
    %v33 = vrot.slane %v26, 4
    %v34 = vadd.f32 %v26, %v33
    %v35 = vrot.slane %v34, 2
    %v36 = vadd.f32 %v34, %v35
    %v37 = vrot.slane %v36, 1
    %v38 = vadd.f32 %v36, %v37
    %v39 = vrcp.pop 8.0
    %v40 = vmul.f32 %v32, %v39
    %v41 = vmul.f32 %v38, %v39
    %v42 = vsub.f32 %v25, %v40
    %v43 = vsub.f32 %v26, %v41
    %v44 = vmul.f32 %v42, %v42
    %v45 = vmul.f32 %v43, %v43
    %v46 = vrot.slane %v44, 4
    %v47 = vadd.f32 %v44, %v46
    %v48 = vrot.slane %v47, 2
    %v49 = vadd.f32 %v47, %v48
    %v50 = vrot.slane %v49, 1
    %v51 = vadd.f32 %v49, %v50
    %v52 = vrot.slane %v45, 4
    %v53 = vadd.f32 %v45, %v52
    %v54 = vrot.slane %v53, 2
    %v55 = vadd.f32 %v53, %v54
    %v56 = vrot.slane %v55, 1
    %v57 = vadd.f32 %v55, %v56
    %v58 = vmul.f32 %v51, %v39
    %v59 = vmul.f32 %v57, %v39
    %v60 = vrsqrt.pop %v58
    %v61 = vmul.f32 %v58, %v60
    %vm62 = vcmp.eq.f32.partialorder %v58, inf
    %v63 = vsel %vm62, %v58, %v61
    %vm64 = vcmp.eq.f32.partialorder %v58, 0.0
    %v65 = vand.u32 %v58, 2147483648
    %v66 = vsel %vm64, %v65, %v63
    %v67 = vrsqrt.pop %v59
    %v68 = vmul.f32 %v59, %v67
    %vm69 = vcmp.eq.f32.partialorder %v59, inf
    %v70 = vsel %vm69, %v59, %v68
    %vm71 = vcmp.eq.f32.partialorder %v59, 0.0
    %v72 = vand.u32 %v59, 2147483648
    %v73 = vsel %vm71, %v72, %v70
    %v74 = vadd.f32 %v66, 1e-08
    %v75 = vadd.f32 %v73, 1e-08
    %v76 = vrcp.pop %v74
    %v77 = vmul.f32 1.0, %v76
    %v78 = vrcp.pop %v75
    %v79 = vmul.f32 1.0, %v78
    %v80 = vmul.f32 %v42, %v77
    %v81 = vmul.f32 %v43, %v79
    %82 = vst [vmem:[#allocation5] sm:$0xff] %v80
    %83 = vst [vmem:[#allocation5 + $0x8] sm:$0xff] %v81
    %v86 = vcombine.low %v40, %v41
    %v88 = vunpack.c.l.s4 1966171168
    %v89 = vunpack.c.0.s8 %v88
    %v90 = vlaneseq
    %v91 = vshrl.u32 %v90, 7
    %v92 = vsub.s32 %v89, %v91
    %v93 = vrot.slane %v86, %v92
    %v95 = vunpack.c.l.s4 1966171168
    %v96 = vunpack.c.0.s8 %v95
    %v97 = vlaneseq
    %v98 = vshrl.u32 %v97, 7
    %v99 = vsub.s32 %v96, %v98
    %v100 = vrot.slane %v93, %v99
    %v102 = vlaneseq
    %vm103 = vcmp.ge.s32.totalorder %v102, 0
    %vm104 = vcmp.lt.s32.totalorder %v102, 256
    %vm105 = vmand %vm103, %vm104
    %106 = vst.msk [vmem:[#allocation6] sm:$0x3] %vm105, %v100
    %v109 = vcombine.low %v58, %v59
    %v111 = vunpack.c.l.s4 1966171168
    %v112 = vunpack.c.0.s8 %v111
    %v113 = vlaneseq
    %v114 = vshrl.u32 %v113, 7
    %v115 = vsub.s32 %v112, %v114
    %v116 = vrot.slane %v109, %v115
    %v118 = vunpack.c.l.s4 1966171168
    %v119 = vunpack.c.0.s8 %v118
    %v120 = vlaneseq
    %v121 = vshrl.u32 %v120, 7
    %v122 = vsub.s32 %v119, %v121
    %v123 = vrot.slane %v116, %v122
    %125 = vst.msk [vmem:[#allocation8] sm:$0x3] %vm105, %v123
    // Predicated region
    $region10: #{fit_and_normalize.1} parent=1 // pred_check
      _
    $region11: #{fit_and_normalize.1} parent=1 // pred_check_branch
      %127 = sbr.rel (0) target = $region13
    $region12: #{fit_and_normalize.1} parent=1 // pred_region
      %s129 = ssub.s32 256, 256
      %130 = vsyncadd [#allocation4], %s129
      %s132 = sshll.u32 [#allocation5], 4
      %s133 = int_to_ptr.vmem [resolvable:$true] %s132
      %135 = dma.vmem_to_hbm [thread:$0]  %s133, 256, %s1, [#allocation4]
    $region13: #{fit_and_normalize.1} parent=1 // pred_fallthru
      _
    // Predicated region
    $region14: #{fit_and_normalize.1} parent=1 // pred_check
      _
    $region15: #{fit_and_normalize.1} parent=1 // pred_check_branch
      %137 = sbr.rel (0) target = $region17
    $region16: #{fit_and_normalize.1} parent=1 // pred_region
      %s139 = ssub.s32 32, 32
      %140 = vsyncadd [#allocation7], %s139
      %s142 = sshll.u32 [#allocation6], 4
      %s143 = int_to_ptr.vmem [resolvable:$true] %s142
      %145 = dma.vmem_to_hbm [thread:$0]  %s143, 32, %s2, [#allocation7]
    $region17: #{fit_and_normalize.1} parent=1 // pred_fallthru
      _
    // Predicated region
    $region18: #{fit_and_normalize.1} parent=1 // pred_check
      _
    $region19: #{fit_and_normalize.1} parent=1 // pred_check_branch
      %147 = sbr.rel (0) target = $region21
    $region20: #{fit_and_normalize.1} parent=1 // pred_region
      %s149 = ssub.s32 32, 32
      %150 = vsyncadd [#allocation7], %s149
      %s152 = sshll.u32 [#allocation8], 4
      %s153 = int_to_ptr.vmem [resolvable:$true] %s152
      %155 = dma.vmem_to_hbm [thread:$0]  %s153, 32, %s3, [#allocation7]
    $region21: #{fit_and_normalize.1} parent=1 // pred_fallthru
      _
    // Predicated region
    $region22: #{fit_and_normalize.1} parent=1 // pred_check
      _
    $region23: #{fit_and_normalize.1} parent=1 // pred_check_branch
      %157 = sbr.rel (0) target = $region25
    $region24: #{fit_and_normalize.1} parent=1 // pred_region
      %158 = dma.done [#allocation4], 256
    $region25: #{fit_and_normalize.1} parent=1 // pred_fallthru
      _
    // Predicated region
    $region26: #{fit_and_normalize.1} parent=1 // pred_check
      _
    $region27: #{fit_and_normalize.1} parent=1 // pred_check_branch
      %160 = sbr.rel (0) target = $region29
    $region28: #{fit_and_normalize.1} parent=1 // pred_region
      %161 = dma.done [#allocation7], 32
    $region29: #{fit_and_normalize.1} parent=1 // pred_fallthru
      _
    // Predicated region
    $region30: #{fit_and_normalize.1} parent=1 // pred_check
      _
    $region31: #{fit_and_normalize.1} parent=1 // pred_check_branch
      %163 = sbr.rel (0) target = $region33
    $region32: #{fit_and_normalize.1} parent=1 // pred_region
      %164 = dma.done [#allocation7], 32
    $region33: #{fit_and_normalize.1} parent=1 // pred_fallthru
      _
    %165 = vsyncpa [#allocation3], 1
    %166 = vsyncpa [#allocation4], 1
    %167 = vsyncpa [#allocation7], 1

</llo_original>
